<compile_context>
chip_gen: v7x
topology: tpu7x:2x2x1
jax: 0.10.0
libtpu: 0.0.40
codegen_flags: <defaults>
</compile_context>

<pallas_src>
import math

import jax
import jax.numpy as jnp
from jax.experimental import pallas as pl
from jax.experimental.pallas import tpu as pltpu

LANE = 128            # batch samples packed along the lane axis
MAX_TILE_ROWS = 2048  # 2048*128*4B = 1 MiB per block; ~4 MiB VMEM double-buffered
MIN_TILE_ROWS = 256   # below this, per-step overhead dominates -> prefer padding


# Packed parameter layout (f32[16], SMEM-resident):
#   [0]    fc1.weight      [1]     fc1.bias
#   [2:5]  fc2.weight[0:3] [5:8]   fc2.bias[0:3]
#   [8:11] fc3.weight[0:3] [11]    fc3.bias
#   [12:16] zero padding
def pack_params(params):
    """Flatten the 11 scalars once at init time (hoisted off the forward path)."""
    w1 = params["w1"].reshape(1)   # fc1.weight (1,1)
    b1 = params["b1"].reshape(1)   # fc1.bias   (1,)
    w2 = params["w2"].reshape(3)   # fc2.weight (3,1)
    b2 = params["b2"].reshape(3)   # fc2.bias   (3,)
    w3 = params["w3"].reshape(3)   # fc3.weight (1,3)
    b3 = params["b3"].reshape(1)   # fc3.bias   (1,)
    return jnp.concatenate(
        [w1, b1, w2, b2, w3, b3, jnp.zeros((4,), jnp.float32)]
    ).astype(jnp.float32)          # (16,)


def _row_layout(batch):
    """Pick (total rows, rows per grid step) for a lane-dense (rows,128) slab."""
    rows = max(1, math.ceil(batch / LANE))
    rows = -(-rows // 8) * 8                        # sublane multiple of 8

    if rows <= MAX_TILE_ROWS:
        # Small/medium batch: split into two equal tiles when possible so both
        # v7x TensorCores get work (one extra grid step is noise on v5e/v6e).
        if rows >= 16:
            rows = -(-rows // 16) * 16              # <=8 extra rows (4 KiB)
            return rows, rows // 2
        return rows, rows                           # tiny batch: single 8-row tile

    # Large batch: largest multiple-of-8 divisor of rows that fits the tile cap
    # (no wasted trailing tile). Fall back to bounded round-up if none exists.
    for tile in range(MAX_TILE_ROWS, MIN_TILE_ROWS - 1, -8):
        if rows % tile == 0:
            return rows, tile
    tile = MAX_TILE_ROWS
    rows = -(-rows // tile) * tile
    return rows, tile


def _build_kernel(batch, rows, tile_rows):
    n_steps = rows // tile_rows
    has_pad = batch < rows * LANE   # static: is there a garbage tail to zero?

    def kernel(p_ref, x_ref, o_ref):
        # p_ref: f32[16] in SMEM; x_ref/o_ref: (tile_rows, 128) f32 in VMEM.
        x = x_ref[...]
        h1 = jnp.maximum(x * p_ref[0] + p_ref[1], 0.0)                    # relu(fc1)
        # Accumulator starts from the j=0 hidden unit (no zeros-splat init);
        # fc3 bias is added once at the end.
        acc = jnp.maximum(h1 * p_ref[2] + p_ref[5], 0.0) * p_ref[8]
        acc = acc + jnp.maximum(h1 * p_ref[3] + p_ref[6], 0.0) * p_ref[9]
        acc = acc + jnp.maximum(h1 * p_ref[4] + p_ref[7], 0.0) * p_ref[10]
        out = acc + p_ref[11]                                             # fc3 bias
        o_ref[...] = out

        if has_pad:
            # Zero the padded tail (it is always confined to the last tile) so
            # the returned slab is safe under any later reduction.
            @pl.when(pl.program_id(0) == n_steps - 1)
            def _():
                base = (n_steps - 1) * tile_rows * LANE
                r = jax.lax.broadcasted_iota(jnp.int32, (tile_rows, LANE), 0)
                c = jax.lax.broadcasted_iota(jnp.int32, (tile_rows, LANE), 1)
                flat = base + r * LANE + c
                o_ref[...] = jnp.where(flat < batch, out, 0.0)

    return kernel


@jax.jit
def example_net_forward(x, packed_params):
    """x: (B, 1) float32. packed_params: f32[16] from pack_params()."""
    B = x.shape[0]
    rows, tile_rows = _row_layout(B)
    aligned = (B == rows * LANE)

    # Lane-dense pack of the batch: (B,1) -> (rows, 128).
    xf = x.reshape(-1).astype(jnp.float32)
    if aligned:
        xp = xf.reshape(rows, LANE)                 # no pad copy on the hot path
    else:
        # TODO(synk): bucket/pre-pad B to a multiple of tile_rows*128 upstream to
        # skip this pad copy and the tail slice (kernel itself is BW-bound).
        xp = jnp.pad(xf, (0, rows * LANE - B)).reshape(rows, LANE)

    out = pl.pallas_call(
        _build_kernel(B, rows, tile_rows),
        out_shape=jax.ShapeDtypeStruct((rows, LANE), jnp.float32),
        grid_spec=pltpu.PrefetchScalarGridSpec(
            num_scalar_prefetch=0,
            grid=(rows // tile_rows,),
            in_specs=[
                # 16 scalars, whole array resident in SMEM.
                pl.BlockSpec(memory_space=pltpu.MemorySpace.SMEM),
                pl.BlockSpec((tile_rows, LANE), lambda i: (i, 0)),
            ],
            out_specs=pl.BlockSpec((tile_rows, LANE), lambda i: (i, 0)),
        ),
        compiler_params=pltpu.CompilerParams(
            dimension_semantics=("parallel",)),
        cost_estimate=pl.CostEstimate(
            flops=18 * rows * LANE,
            transcendentals=0,
            bytes_accessed=2 * rows * LANE * 4 + 64),
    )(packed_params, xp)

    if aligned:
        return out.reshape(B, 1)
    # Padded tail (already zeroed in-kernel) is discarded here.
    return out.reshape(-1)[:B].reshape(B, 1)


def _init_params(key):
    # Deterministic init mimicking nn.Linear's U(-1/sqrt(fan_in), 1/sqrt(fan_in)).
    ks = jax.random.split(key, 6)

    def u(k, shape, fan_in):
        bound = 1.0 / jnp.sqrt(jnp.float32(fan_in))
        return jax.random.uniform(k, shape, jnp.float32, -bound, bound)

    return {
        "w1": u(ks[0], (1, 1), 1), "b1": u(ks[1], (1,), 1),
        "w2": u(ks[2], (3, 1), 1), "b2": u(ks[3], (3,), 1),
        "w3": u(ks[4], (1, 3), 3), "b3": u(ks[5], (1,), 3),
    }


def _reference(x, p):
    h1 = jnp.maximum(x @ p["w1"].T + p["b1"], 0.0)
    h2 = jnp.maximum(h1 @ p["w2"].T + p["b2"], 0.0)
    return h2 @ p["w3"].T + p["b3"]


if __name__ == "__main__":
    key = jax.random.PRNGKey(0)
    pkey, xkey = jax.random.split(key)
    params = _init_params(pkey)
    packed = pack_params(params)                       # done once, reused per call
    x = jax.random.normal(xkey, (2, 1), jnp.float32)   # batch=2, in_features=1

    out = jax.block_until_ready(example_net_forward(x, packed))

    ref = _reference(x, params)
    assert out.shape == (2, 1), out.shape
    assert jnp.allclose(out, ref, atol=1e-5, rtol=1e-5), (out, ref)
    print("KERNEL_OK")
</pallas_src>

<mosaic_0001>
module attributes {stable_mosaic.version = 11 : i64} {
  func.func @kernel(%arg0: i32, %arg1: memref<16xf32, #tpu.memory_space<smem>>, %arg2: memref<8x128xf32, #tpu.memory_space<vmem>>, %arg3: memref<8x128xf32, #tpu.memory_space<vmem>>) attributes {dimension_semantics = [#tpu.dimension_semantics<parallel>], iteration_bounds = array<i64: 1>, scalar_prefetch = 0 : i64, scratch_operands = 0 : i64, tpu.core_type = #tpu.core_type<tc>, window_params = [{transform_indices = @transform_0, window_bounds = array<i64: 16>}, {transform_indices = @transform_1, window_bounds = array<i64: 8, 128>}, {transform_indices = @transform_2, window_bounds = array<i64: 8, 128>}]} {
    %c0 = arith.constant 0 : index
    %c0_0 = arith.constant 0 : index
    %0 = vector.load %arg2[%c0, %c0_0] : memref<8x128xf32, #tpu.memory_space<vmem>>, vector<8x128xf32>
    %c0_1 = arith.constant 0 : index
    %1 = memref.load %arg1[%c0_1] : memref<16xf32, #tpu.memory_space<smem>>
    %2 = vector.broadcast %1 : f32 to vector<8x128xf32>
    %3 = arith.mulf %0, %2 : vector<8x128xf32>
    %c1 = arith.constant 1 : index
    %4 = memref.load %arg1[%c1] : memref<16xf32, #tpu.memory_space<smem>>
    %5 = vector.broadcast %4 : f32 to vector<8x128xf32>
    %6 = arith.addf %3, %5 : vector<8x128xf32>
    %cst = arith.constant 0.000000e+00 : f32
    %7 = vector.broadcast %cst : f32 to vector<8x128xf32>
    %8 = arith.maximumf %6, %7 : vector<8x128xf32>
    %c2 = arith.constant 2 : index
    %9 = memref.load %arg1[%c2] : memref<16xf32, #tpu.memory_space<smem>>
    %10 = vector.broadcast %9 : f32 to vector<8x128xf32>
    %11 = arith.mulf %8, %10 : vector<8x128xf32>
    %c5 = arith.constant 5 : index
    %12 = memref.load %arg1[%c5] : memref<16xf32, #tpu.memory_space<smem>>
    %13 = vector.broadcast %12 : f32 to vector<8x128xf32>
    %14 = arith.addf %11, %13 : vector<8x128xf32>
    %cst_2 = arith.constant 0.000000e+00 : f32
    %15 = vector.broadcast %cst_2 : f32 to vector<8x128xf32>
    %16 = arith.maximumf %14, %15 : vector<8x128xf32>
    %c8 = arith.constant 8 : index
    %17 = memref.load %arg1[%c8] : memref<16xf32, #tpu.memory_space<smem>>
    %18 = vector.broadcast %17 : f32 to vector<8x128xf32>
    %19 = arith.mulf %16, %18 : vector<8x128xf32>
    %c3 = arith.constant 3 : index
    %20 = memref.load %arg1[%c3] : memref<16xf32, #tpu.memory_space<smem>>
    %21 = vector.broadcast %20 : f32 to vector<8x128xf32>
    %22 = arith.mulf %8, %21 : vector<8x128xf32>
    %c6 = arith.constant 6 : index
    %23 = memref.load %arg1[%c6] : memref<16xf32, #tpu.memory_space<smem>>
    %24 = vector.broadcast %23 : f32 to vector<8x128xf32>
    %25 = arith.addf %22, %24 : vector<8x128xf32>
    %cst_3 = arith.constant 0.000000e+00 : f32
    %26 = vector.broadcast %cst_3 : f32 to vector<8x128xf32>
    %27 = arith.maximumf %25, %26 : vector<8x128xf32>
    %c9 = arith.constant 9 : index
    %28 = memref.load %arg1[%c9] : memref<16xf32, #tpu.memory_space<smem>>
    %29 = vector.broadcast %28 : f32 to vector<8x128xf32>
    %30 = arith.mulf %27, %29 : vector<8x128xf32>
    %31 = arith.addf %19, %30 : vector<8x128xf32>
    %c4 = arith.constant 4 : index
    %32 = memref.load %arg1[%c4] : memref<16xf32, #tpu.memory_space<smem>>
    %33 = vector.broadcast %32 : f32 to vector<8x128xf32>
    %34 = arith.mulf %8, %33 : vector<8x128xf32>
    %c7 = arith.constant 7 : index
    %35 = memref.load %arg1[%c7] : memref<16xf32, #tpu.memory_space<smem>>
    %36 = vector.broadcast %35 : f32 to vector<8x128xf32>
    %37 = arith.addf %34, %36 : vector<8x128xf32>
    %cst_4 = arith.constant 0.000000e+00 : f32
    %38 = vector.broadcast %cst_4 : f32 to vector<8x128xf32>
    %39 = arith.maximumf %37, %38 : vector<8x128xf32>
    %c10 = arith.constant 10 : index
    %40 = memref.load %arg1[%c10] : memref<16xf32, #tpu.memory_space<smem>>
    %41 = vector.broadcast %40 : f32 to vector<8x128xf32>
    %42 = arith.mulf %39, %41 : vector<8x128xf32>
    %43 = arith.addf %31, %42 : vector<8x128xf32>
    %c11 = arith.constant 11 : index
    %44 = memref.load %arg1[%c11] : memref<16xf32, #tpu.memory_space<smem>>
    %45 = vector.broadcast %44 : f32 to vector<8x128xf32>
    %46 = arith.addf %43, %45 : vector<8x128xf32>
    %c0_5 = arith.constant 0 : index
    %c0_6 = arith.constant 0 : index
    %47 = vector.load %arg3[%c0_5, %c0_6] : memref<8x128xf32, #tpu.memory_space<vmem>>, vector<8x128xf32>
    tpu.vector_store %arg3[%c0_5, %c0_6], %46 {strides = array<i32>} : memref<8x128xf32, #tpu.memory_space<vmem>>, vector<8x128xf32>,
    %c0_i32 = arith.constant 0 : i32
    %48 = arith.cmpi eq, %arg0, %c0_i32 : i32
    %49 = arith.extui %48 : i1 to i32
    %c0_i32_7 = arith.constant 0 : i32
    %50 = arith.cmpi ne, %49, %c0_i32_7 : i32
    scf.if %50 {
      %51 = tpu.iota {dimensions = array<i32: 0>} : vector<8x128xi32>
      %52 = tpu.iota {dimensions = array<i32: 1>} : vector<8x128xi32>
      %c128_i32 = arith.constant 128 : i32
      %53 = vector.broadcast %c128_i32 : i32 to vector<8x128xi32>
      %54 = arith.muli %51, %53 : vector<8x128xi32>
      %c0_i32_8 = arith.constant 0 : i32
      %55 = vector.broadcast %c0_i32_8 : i32 to vector<8x128xi32>
      %56 = arith.addi %55, %54 : vector<8x128xi32>
      %57 = arith.addi %56, %52 : vector<8x128xi32>
      %c2_i32 = arith.constant 2 : i32
      %58 = vector.broadcast %c2_i32 : i32 to vector<8x128xi32>
      %59 = arith.cmpi slt, %57, %58 : vector<8x128xi32>
      %cst_9 = arith.constant 0.000000e+00 : f32
      %60 = vector.broadcast %cst_9 : f32 to vector<8x128xf32>
      %61 = arith.select %59, %46, %60 : vector<8x128xi1>, vector<8x128xf32>
      %c0_10 = arith.constant 0 : index
      %c0_11 = arith.constant 0 : index
      %62 = vector.load %arg3[%c0_10, %c0_11] : memref<8x128xf32, #tpu.memory_space<vmem>>, vector<8x128xf32>
      tpu.vector_store %arg3[%c0_10, %c0_11], %61 {strides = array<i32>} : memref<8x128xf32, #tpu.memory_space<vmem>>, vector<8x128xf32>,
    } else {
    }
    return
  }
  func.func @transform_0(%arg0: i32) -> i32 {
    %c0_i32 = arith.constant 0 : i32
    %c0_i32_0 = arith.constant 0 : i32
    return %c0_i32 : i32
  }
  func.func @transform_1(%arg0: i32) -> (i32, i32) {
    %c0_i32 = arith.constant 0 : i32
    %c0_i32_0 = arith.constant 0 : i32
    return %arg0, %c0_i32 : i32, i32
  }
  func.func @transform_2(%arg0: i32) -> (i32, i32) {
    %c0_i32 = arith.constant 0 : i32
    %c0_i32_0 = arith.constant 0 : i32
    return %arg0, %c0_i32 : i32, i32
  }
}

</mosaic_0001>

<llo_original>
// kernel: example_net_forward.1
$region0: #{example_net_forward.1}
  #allocation0 [shape = 'u32[]', space=smem, size = 0x4, offset = 0x4, fixed_abs, tag = 'smem constant byte address 0x4 - core index']
  #allocation1 [shape = 'u32[144,128]{1,0:T(1,128)}', space=vmem, size = 0x12000, scoped, tag = 'internal scratch']
  %s0 = inlined_call_operand.vmem [shape: f32[16], index: 0, kind: input, shape index: {}]
  %s1 = inlined_call_operand.vmem [shape: f32[8,128], index: 1, kind: input, shape index: {}]
  %s2 = inlined_call_operand.vmem [shape: f32[8,128], index: 2, kind: output, shape index: {}]
  %s3 = sld [smem:[#allocation0]]
  $region26: #{example_net_forward.1} parent=0
    _
  %s5 = ssub.s32 1, %s3
  %s6 = scalar_select 0, %s5, %s3
  $region1: #{example_net_forward.1} parent=0
    #allocation2 [shape = 'u8[512]{0}', space=smem, size = 0x200, scoped, tag = 'input window, operand 0, single buffered']
    #allocation3 [shape = 's32[1]{0}', space=sflag, size = 0x4, scoped, tag = 'scoped memory for example_net_forward.1']
    %7 = vsyncpa [#allocation3], 0
    // Predicated region
    $region2: #{example_net_forward.1} parent=1 // pred_check
      _
    $region3: #{example_net_forward.1} parent=1 // pred_check_branch
      %9 = sbr.rel (0) target = $region5
    $region4: #{example_net_forward.1} parent=1 // pred_region
      %s11 = ssub.s32 16, 16
      %12 = vsyncadd [#allocation3], %s11
      %s14 = sshll.u32 %s0, 4
      %s15 = int_to_ptr.vmem [resolvable:$true] %s14
      %17 = dma.vmem_to_smem %s15, 16, [#allocation2], [#allocation3]
    $region5: #{example_net_forward.1} parent=1 // pred_fallthru
      _
    // Predicated region
    $region6: #{example_net_forward.1} parent=1 // pred_check
      _
    $region7: #{example_net_forward.1} parent=1 // pred_check_branch
      %19 = sbr.rel (0) target = $region9
    $region8: #{example_net_forward.1} parent=1 // pred_region
      _
    $region9: #{example_net_forward.1} parent=1 // pred_fallthru
      _
    // Predicated region
    $region10: #{example_net_forward.1} parent=1 // pred_check
      _
    $region11: #{example_net_forward.1} parent=1 // pred_check_branch
      %21 = sbr.rel (0) target = $region13
    $region12: #{example_net_forward.1} parent=1 // pred_region
      %22 = dma.done [#allocation3], 16
    $region13: #{example_net_forward.1} parent=1 // pred_fallthru
      _
    %23 = sfence
    %v24 = vld [vmem:[%s1] sm:$0xff]
    %s25 = sld [smem:[#allocation2]]
    %v26 = vstv %s25
    %v27 = vmul.f32 %v24, %v26
    %s28 = sld [smem:[#allocation2 + $0x1]]
    %v29 = vstv %s28
    %v30 = vadd.f32 %v27, %v29
    %v31 = vmax.f32 %v30, 0.0
    %s32 = sld [smem:[#allocation2 + $0x2]]
    %v33 = vstv %s32
    %v34 = vmul.f32 %v31, %v33
    %s35 = sld [smem:[#allocation2 + $0x5]]
    %v36 = vstv %s35
    %v37 = vadd.f32 %v34, %v36
    %v38 = vmax.f32 %v37, 0.0
    %s39 = sld [smem:[#allocation2 + $0x8]]
    %v40 = vstv %s39
    %v41 = vmul.f32 %v38, %v40
    %s42 = sld [smem:[#allocation2 + $0x3]]
    %v43 = vstv %s42
    %v44 = vmul.f32 %v31, %v43
    %s45 = sld [smem:[#allocation2 + $0x6]]
    %v46 = vstv %s45
    %v47 = vadd.f32 %v44, %v46
    %v48 = vmax.f32 %v47, 0.0
    %s49 = sld [smem:[#allocation2 + $0x9]]
    %v50 = vstv %s49
    %v51 = vmul.f32 %v48, %v50
    %v52 = vadd.f32 %v41, %v51
    %s53 = sld [smem:[#allocation2 + $0x4]]
    %v54 = vstv %s53
    %v55 = vmul.f32 %v31, %v54
    %s56 = sld [smem:[#allocation2 + $0x7]]
    %v57 = vstv %s56
    %v58 = vadd.f32 %v55, %v57
    %v59 = vmax.f32 %v58, 0.0
    %s60 = sld [smem:[#allocation2 + $0xa]]
    %v61 = vstv %s60
    %v62 = vmul.f32 %v59, %v61
    %v63 = vadd.f32 %v52, %v62
    %s64 = sld [smem:[#allocation2 + $0xb]]
    %v65 = vstv %s64
    %v66 = vadd.f32 %v63, %v65
    %67 = vst [vmem:[%s2] sm:$0xff] %v66
    %p68 = scmp.eq.s32.totalorder 0, 0
    // Predicated region
    $region14: #{example_net_forward.1} parent=1 // pred_check
      %p69 = pneg %p68
    $region15: #{example_net_forward.1} parent=1 // pred_check_branch
      %71 = sbr.rel (%p69) target = $region17
    $region16: #{example_net_forward.1} parent=1 // pred_region
      %v72 = vlaneseq
      %v73 = vshrl.u32 %v72, 7
      %v74 = vlaneseq
      %v75 = vand.u32 %v74, 127
      %v76 = vmul.u32 %v73, 128
      %v77 = vadd.s32 %v76, %v75
      %vm78 = vcmp.lt.s32.totalorder %v77, 2
      %v79 = vsel %vm78, %v66, 0.0
      %80 = vst [vmem:[%s2] sm:$0xff] %v79
    $region17: #{example_net_forward.1} parent=1 // pred_fallthru
      _
    // Predicated region
    $region18: #{example_net_forward.1} parent=1 // pred_check
      _
    $region19: #{example_net_forward.1} parent=1 // pred_check_branch
      %82 = sbr.rel (0) target = $region21
    $region20: #{example_net_forward.1} parent=1 // pred_region
      _
    $region21: #{example_net_forward.1} parent=1 // pred_fallthru
      _
    // Predicated region
    $region22: #{example_net_forward.1} parent=1 // pred_check
      _
    $region23: #{example_net_forward.1} parent=1 // pred_check_branch
      %84 = sbr.rel (0) target = $region25
    $region24: #{example_net_forward.1} parent=1 // pred_region
      _
    $region25: #{example_net_forward.1} parent=1 // pred_fallthru
      _
    %85 = vsyncpa [#allocation3], 1

</llo_original>
